<compile_context>
chip_gen: v7x
topology: tpu7x:2x2x1
jax: 0.10.0
libtpu: 0.0.40
codegen_flags: <defaults>
</compile_context>

<pallas_src>
import functools

import jax
import jax.numpy as jnp
from jax import lax
from jax.experimental import pallas as pl
from jax.experimental.pallas import tpu as pltpu

NEG_SLOPE = 0.01   # F.leaky_relu default
BN_EPS = 1e-5      # nn.BatchNorm2d default


# ----------------------------- helpers -----------------------------
def _vmem_capacity_bytes():
    """Per-generation VMEM capacity (64 MiB on v7x, 128 MiB on v5e/v6e)."""
    try:
        info = pltpu.get_tpu_info()
        cap = int(getattr(info, "vmem_capacity_bytes", 0) or 0)
        if cap > 0:
            return cap
    except Exception:
        pass
    return 64 * 1024 * 1024            # conservative default (v7x per-core)


def _pick_chunk(total, target):
    """Largest chunk <= target that divides `total` and keeps lanes dense
    (multiple of 128); otherwise fall back to the full extent (whole-dim blocks
    are always layout-legal)."""
    if total % 128 == 0:
        c = max(128, min(target, total) - (min(target, total) % 128))
        while total % c:
            c -= 128
        return c
    # TODO(synk): a very large Ho*Wo that is not a multiple of 128 falls back to a
    # single whole-row-plane block; add a masked tail path if that ever matters.
    return total


# -------- kernel 1: conv (K*K folded into contraction) + bias + leaky_relu
# --------            + PxP max-pool + per-tile BatchNorm partials --------------
def _conv_pool_kernel(x_ref, w_ref, b_ref, out_ref, s1_ref, m2_ref, *,
                      num_phases, inv_count):
    # x_ref  : (1, CDIM, Rb)      pool-phase window chunk (compute dtype), lane-dense
    # w_ref  : (P*P, Cout, CDIM)  per-pool-phase zero-padded weights (resident)
    # b_ref  : (Cout, 1)          conv bias (f32)
    # out_ref: (1, Cout, Rb)      pooled+activated chunk, channel-planar NCHW layout
    # s1_ref : (1, 1, Cout, 1)    per-tile BN partial: sum(x)
    # m2_ref : (1, 1, Cout, 1)    per-tile BN partial: sum((x - tile_mean)^2)
    x = x_ref[0]                                                    # (CDIM, Rb)

    # One MXU dot per pool phase; max-pool folded into a single f32 accumulator.
    acc = jnp.dot(w_ref[0], x, preferred_element_type=jnp.float32)  # (Cout, Rb)
    for p in range(1, num_phases):
        acc = jnp.maximum(acc,
                          jnp.dot(w_ref[p], x, preferred_element_type=jnp.float32))

    pooled = acc + b_ref[...]                                       # bias commutes with max
    pooled = jnp.where(pooled > 0, pooled, NEG_SLOPE * pooled)      # leaky_relu (monotone)
    out_ref[0] = pooled.astype(out_ref.dtype)

    # Per-tile mean-centred BatchNorm partials (Chan/Welford merge in the wrapper).
    s1 = jnp.sum(pooled, axis=1, keepdims=True)                     # (Cout, 1)
    d = pooled - s1 * inv_count
    s1_ref[0, 0] = s1
    m2_ref[0, 0] = jnp.sum(d * d, axis=1, keepdims=True)


# -------- kernel 2: lane-dense BatchNorm affine over the channel-planar buffer ------
def _bn_apply_kernel(x_ref, sc_ref, sh_ref, o_ref):
    # x_ref: (1, Cout, chunk) pooled dtype; sc/sh: (Cout, 1) f32; o_ref: (1, Cout, chunk) f32
    o_ref[0] = x_ref[0].astype(jnp.float32) * sc_ref[...] + sh_ref[...]


# ----------------------------- wrapper -----------------------------
def conv_net_forward(x_nchw, w_oihw, bias, gamma, beta, *,
                     pool_stride=2, batch_norm=True, compute_dtype=jnp.bfloat16):
    N, Cin, H, W = x_nchw.shape
    Cout, Cin_w, K, K_w = w_oihw.shape
    assert Cin_w == Cin and K_w == K
    assert K % 2 == 1, "'same' padding path implemented for odd kernel sizes"
    P = int(pool_stride)
    assert H % P == 0 and W % P == 0, "spatial dims must be divisible by pool_stride"
    # TODO(synk): PyTorch MaxPool2d floors non-divisible spatial sizes; not handled.

    Ho, Wo = H // P, W // P
    HW = Ho * Wo
    pad = K // 2
    U = P + K - 1                       # distinct shifted windows per axis
    CDIM = U * U * Cin                  # MXU contraction depth (K*K taps folded in)
    esize = jnp.dtype(compute_dtype).itemsize
    pooled_dtype = compute_dtype        # bf16 intermediate halves kernel-2 HBM traffic

    # ---- per-generation tiling / VMEM budget ----
    vmem_cap = _vmem_capacity_bytes()
    vmem_limit = max(32 * 1024 * 1024, min(int(vmem_cap * 0.6), 96 * 1024 * 1024))
    per_col = CDIM * esize * 2 + Cout * (esize + 4) * 2      # double-buffered in+out per lane
    target_r = max(128, min(16384, (vmem_limit // 2) // max(per_col, 1)))
    Rb = _pick_chunk(HW, target_r)
    T = HW // Rb
    if N * T == 1 and Rb % 256 == 0:    # keep >= 2 grid steps for the 2 TCs on v7x
        Rb //= 2
        T = HW // Rb

    # ---- wrapper glue: pool-phase windows (channel-major, flat pooled-pixel axis) ----
    xc = x_nchw.astype(compute_dtype)
    xp = jnp.pad(xc, ((0, 0), (0, 0), (pad, pad), (pad, pad)))
    wins = [xp[:, :, u::P, v::P][:, :, :Ho, :Wo]             # each (N, Cin, Ho, Wo)
            for u in range(U) for v in range(U)]
    xwin = jnp.stack(wins, axis=1).reshape(N, CDIM, HW)       # (N, U*U*Cin, Ho*Wo)

    # Per-pool-phase zero-padded weights: fold the K*K taps into the contraction.
    wt = jnp.transpose(w_oihw, (0, 2, 3, 1)).astype(jnp.float32)   # (Cout, K, K, Cin)
    wz = jnp.zeros((P * P, Cout, U, U, Cin), jnp.float32)
    for r in range(P):
        for s in range(P):
            wz = wz.at[r * P + s, :, r:r + K, s:s + K, :].set(wt)
    wz = wz.reshape(P * P, Cout, CDIM).astype(compute_dtype)
    b_col = bias.reshape(Cout, 1).astype(jnp.float32)

    kernel1 = functools.partial(_conv_pool_kernel, num_phases=P * P,
                                inv_count=float(1.0 / Rb))
    flops1 = 2 * N * HW * (P * P) * Cout * CDIM
    bytes1 = (xwin.size * esize + wz.size * esize + Cout * 4
              + N * Cout * HW * jnp.dtype(pooled_dtype).itemsize + 2 * N * T * Cout * 4)

    pooled, ssum, sm2 = pl.pallas_call(
        kernel1,
        out_shape=(jax.ShapeDtypeStruct((N, Cout, HW), pooled_dtype),
                   jax.ShapeDtypeStruct((N, T, Cout, 1), jnp.float32),
                   jax.ShapeDtypeStruct((N, T, Cout, 1), jnp.float32)),
        grid=(N, T),
        in_specs=[
            pl.BlockSpec((1, CDIM, Rb), lambda n, t: (n, 0, t)),
            pl.BlockSpec((P * P, Cout, CDIM), lambda n, t: (0, 0, 0)),   # resident
            pl.BlockSpec((Cout, 1), lambda n, t: (0, 0)),                # resident
        ],
        out_specs=(pl.BlockSpec((1, Cout, Rb), lambda n, t: (n, 0, t)),
                   pl.BlockSpec((1, 1, Cout, 1), lambda n, t: (n, t, 0, 0)),
                   pl.BlockSpec((1, 1, Cout, 1), lambda n, t: (n, t, 0, 0))),
        compiler_params=pltpu.CompilerParams(
            dimension_semantics=("parallel", "parallel"),
            vmem_limit_bytes=vmem_limit),
        cost_estimate=pl.CostEstimate(flops=int(flops1), transcendentals=0,
                                      bytes_accessed=int(bytes1)),
    )(xwin, wz, b_col)

    if not batch_norm:
        return pooled.astype(jnp.float32).reshape(N, Cout, Ho, Wo)

    # ---- global BN batch statistics: Chan/Welford merge of the per-tile partials ----
    cnt = jnp.float32(Rb)
    total = jnp.float32(N * HW)
    s_sum = ssum.reshape(N * T, Cout)
    s_m2 = sm2.reshape(N * T, Cout)
    mean = jnp.sum(s_sum, axis=0) / total
    tile_mean = s_sum / cnt
    m2 = (jnp.sum(s_m2, axis=0)
          + cnt * jnp.sum(jnp.square(tile_mean - mean[None, :]), axis=0))
    var = jnp.maximum(m2 / total, 0.0)                 # biased (training-mode) variance
    scale = gamma.astype(jnp.float32) * lax.rsqrt(var + BN_EPS)
    shift = beta.astype(jnp.float32) - mean * scale
    sc_col = scale.reshape(Cout, 1)
    sh_col = shift.reshape(Cout, 1)

    # ---- kernel 2: lane-dense affine normalize, output already channel-planar NCHW ----
    chunk = _pick_chunk(HW, 8192)
    T2 = HW // chunk
    bytes2 = (pooled.size * jnp.dtype(pooled_dtype).itemsize
              + N * Cout * HW * 4 + 2 * Cout * 4)
    out = pl.pallas_call(
        _bn_apply_kernel,
        out_shape=jax.ShapeDtypeStruct((N, Cout, HW), jnp.float32),
        grid=(N, T2),
        in_specs=[pl.BlockSpec((1, Cout, chunk), lambda n, t: (n, 0, t)),
                  pl.BlockSpec((Cout, 1), lambda n, t: (0, 0)),
                  pl.BlockSpec((Cout, 1), lambda n, t: (0, 0))],
        out_specs=pl.BlockSpec((1, Cout, chunk), lambda n, t: (n, 0, t)),
        compiler_params=pltpu.CompilerParams(
            dimension_semantics=("parallel", "parallel"),
            vmem_limit_bytes=vmem_limit),
        cost_estimate=pl.CostEstimate(flops=int(2 * N * Cout * HW), transcendentals=0,
                                      bytes_accessed=int(bytes2)),
    )(pooled, sc_col, sh_col)

    return out.reshape(N, Cout, Ho, Wo)


# ---------------- pure-JAX reference (for self-check) ----------------
def conv_net_reference(x, w, b, gamma, beta, *, pool_stride=2):
    K = w.shape[2]
    pad = K // 2
    conv = lax.conv_general_dilated(
        x, w, window_strides=(1, 1),
        padding=[(pad, pad), (pad, pad)],
        dimension_numbers=('NCHW', 'OIHW', 'NCHW'))
    conv = conv + b[None, :, None, None]
    act = jnp.where(conv > 0, conv, NEG_SLOPE * conv)
    pooled = lax.reduce_window(
        act, -jnp.inf, lax.max,
        window_dimensions=(1, 1, pool_stride, pool_stride),
        window_strides=(1, 1, pool_stride, pool_stride),
        padding='VALID')
    mean = jnp.mean(pooled, axis=(0, 2, 3), keepdims=True)
    var = jnp.mean(jnp.square(pooled - mean), axis=(0, 2, 3), keepdims=True)
    return ((pooled - mean) * lax.rsqrt(var + BN_EPS)
            * gamma[None, :, None, None] + beta[None, :, None, None])


if __name__ == "__main__":
    N, Cin, H, W = 2, 4, 16, 16
    Cout, K, pool_stride = 8, 3, 2

    key = jax.random.PRNGKey(0)
    kx, kw, kb, kg, kbeta = jax.random.split(key, 5)
    x = jax.random.normal(kx, (N, Cin, H, W), dtype=jnp.float32)
    w = jax.random.normal(kw, (Cout, Cin, K, K), dtype=jnp.float32) * 0.1
    b = jax.random.normal(kb, (Cout,), dtype=jnp.float32) * 0.1
    gamma = 1.0 + 0.1 * jax.random.normal(kg, (Cout,), dtype=jnp.float32)
    beta = 0.1 * jax.random.normal(kbeta, (Cout,), dtype=jnp.float32)

    # ---- check 1: f32 compute path vs f32 reference ----
    fwd_f32 = jax.jit(functools.partial(conv_net_forward, pool_stride=pool_stride,
                                        compute_dtype=jnp.float32))
    out_f32 = jax.block_until_ready(fwd_f32(x, w, b, gamma, beta))
    ref = jax.block_until_ready(
        conv_net_reference(x, w, b, gamma, beta, pool_stride=pool_stride))
    assert out_f32.shape == (N, Cout, H // pool_stride, W // pool_stride), out_f32.shape
    err = float(jnp.max(jnp.abs(out_f32 - ref)))
    assert err < 1e-3, f"f32 max abs err {err}"

    # ---- check 2: bf16 MXU path + bf16 pooled intermediate, on bf16-representable
    #      inputs (same quantization applied to the reference; accumulation is f32
    #      in both, looser tolerance covers the bf16 storage of the intermediate) ----
    xq = x.astype(jnp.bfloat16).astype(jnp.float32)
    wq = w.astype(jnp.bfloat16).astype(jnp.float32)
    fwd_bf16 = jax.jit(functools.partial(conv_net_forward, pool_stride=pool_stride,
                                         compute_dtype=jnp.bfloat16))
    out_bf16 = jax.block_until_ready(fwd_bf16(xq, wq, b, gamma, beta))
    ref_q = jax.block_until_ready(
        conv_net_reference(xq, wq, b, gamma, beta, pool_stride=pool_stride))
    err = float(jnp.max(jnp.abs(out_bf16 - ref_q)))
    assert err < 2.5e-2, f"bf16 max abs err {err}"

    # ---- check 3: generality of the phase/window decomposition (K=5, and P=3) ----
    for (n2, cin2, h2, cout2, k2, p2) in ((1, 3, 12, 8, 5, 2), (1, 2, 12, 8, 3, 3)):
        ks = jax.random.split(jax.random.PRNGKey(k2 * 10 + p2), 5)
        x2 = jax.random.normal(ks[0], (n2, cin2, h2, h2), dtype=jnp.float32)
        w2 = jax.random.normal(ks[1], (cout2, cin2, k2, k2), dtype=jnp.float32) * 0.1
        b2 = jax.random.normal(ks[2], (cout2,), dtype=jnp.float32) * 0.1
        g2 = 1.0 + 0.1 * jax.random.normal(ks[3], (cout2,), dtype=jnp.float32)
        be2 = 0.1 * jax.random.normal(ks[4], (cout2,), dtype=jnp.float32)
        o2 = jax.block_until_ready(conv_net_forward(
            x2, w2, b2, g2, be2, pool_stride=p2, compute_dtype=jnp.float32))
        r2 = jax.block_until_ready(
            conv_net_reference(x2, w2, b2, g2, be2, pool_stride=p2))
        err = float(jnp.max(jnp.abs(o2 - r2)))
        assert err < 1e-3, f"K={k2} P={p2} max abs err {err}"

    print("KERNEL_OK")
</pallas_src>

<mosaic_0001>
module attributes {stable_mosaic.version = 11 : i64} {
  func.func @_conv_pool_kernel(%arg0: i32, %arg1: i32, %arg2: memref<1x64x64xf32, #tpu.memory_space<vmem>>, %arg3: memref<4x8x64xf32, #tpu.memory_space<vmem>>, %arg4: memref<8x1xf32, #tpu.memory_space<vmem>>, %arg5: memref<1x8x64xf32, #tpu.memory_space<vmem>>, %arg6: memref<1x1x8x1xf32, #tpu.memory_space<vmem>>, %arg7: memref<1x1x8x1xf32, #tpu.memory_space<vmem>>) attributes {dimension_semantics = [#tpu.dimension_semantics<parallel>, #tpu.dimension_semantics<parallel>], iteration_bounds = array<i64: 2, 1>, scalar_prefetch = 0 : i64, scratch_operands = 0 : i64, tpu.core_type = #tpu.core_type<tc>, window_params = [{transform_indices = @transform_0, window_bounds = array<i64: 1, 64, 64>}, {pipeline_mode = #tpu.pipeline_mode<synchronous>, transform_indices = @transform_1, window_bounds = array<i64: 4, 8, 64>}, {pipeline_mode = #tpu.pipeline_mode<synchronous>, transform_indices = @transform_2, window_bounds = array<i64: 8, 1>}, {transform_indices = @transform_3, window_bounds = array<i64: 1, 8, 64>}, {transform_indices = @transform_4, window_bounds = array<i64: 1, 1, 8, 1>}, {transform_indices = @transform_5, window_bounds = array<i64: 1, 1, 8, 1>}]} {
    %c0 = arith.constant 0 : index
    %c0_0 = arith.constant 0 : index
    %c0_1 = arith.constant 0 : index
    %0 = vector.load %arg2[%c0, %c0_0, %c0_1] : memref<1x64x64xf32, #tpu.memory_space<vmem>>, vector<1x64x64xf32>
    %1 = vector.shape_cast %0 : vector<1x64x64xf32> to vector<64x64xf32>
    %c0_2 = arith.constant 0 : index
    %c0_3 = arith.constant 0 : index
    %c0_4 = arith.constant 0 : index
    %2 = vector.load %arg3[%c0_2, %c0_3, %c0_4] : memref<4x8x64xf32, #tpu.memory_space<vmem>>, vector<1x8x64xf32>
    %3 = vector.shape_cast %2 : vector<1x8x64xf32> to vector<8x64xf32>
    %cst = arith.constant dense<0.000000e+00> : vector<8x64xf32>
    %4 = tpu.matmul %3, %1, %cst {dimension_numbers = #tpu.dot_dimension_numbers<[1], [0], [0], [1], [0, 0, 1, 1], [], []>} : vector<8x64xf32>, vector<64x64xf32>, vector<8x64xf32> -> vector<8x64xf32>
    %c1 = arith.constant 1 : index
    %c0_5 = arith.constant 0 : index
    %c0_6 = arith.constant 0 : index
    %5 = vector.load %arg3[%c1, %c0_5, %c0_6] : memref<4x8x64xf32, #tpu.memory_space<vmem>>, vector<1x8x64xf32>
    %6 = vector.shape_cast %5 : vector<1x8x64xf32> to vector<8x64xf32>
    %cst_7 = arith.constant dense<0.000000e+00> : vector<8x64xf32>
    %7 = tpu.matmul %6, %1, %cst_7 {dimension_numbers = #tpu.dot_dimension_numbers<[1], [0], [0], [1], [0, 0, 1, 1], [], []>} : vector<8x64xf32>, vector<64x64xf32>, vector<8x64xf32> -> vector<8x64xf32>
    %8 = arith.maximumf %4, %7 : vector<8x64xf32>
    %c2 = arith.constant 2 : index
    %c0_8 = arith.constant 0 : index
    %c0_9 = arith.constant 0 : index
    %9 = vector.load %arg3[%c2, %c0_8, %c0_9] : memref<4x8x64xf32, #tpu.memory_space<vmem>>, vector<1x8x64xf32>
    %10 = vector.shape_cast %9 : vector<1x8x64xf32> to vector<8x64xf32>
    %cst_10 = arith.constant dense<0.000000e+00> : vector<8x64xf32>
    %11 = tpu.matmul %10, %1, %cst_10 {dimension_numbers = #tpu.dot_dimension_numbers<[1], [0], [0], [1], [0, 0, 1, 1], [], []>} : vector<8x64xf32>, vector<64x64xf32>, vector<8x64xf32> -> vector<8x64xf32>
    %12 = arith.maximumf %8, %11 : vector<8x64xf32>
    %c3 = arith.constant 3 : index
    %c0_11 = arith.constant 0 : index
    %c0_12 = arith.constant 0 : index
    %13 = vector.load %arg3[%c3, %c0_11, %c0_12] : memref<4x8x64xf32, #tpu.memory_space<vmem>>, vector<1x8x64xf32>
    %14 = vector.shape_cast %13 : vector<1x8x64xf32> to vector<8x64xf32>
    %cst_13 = arith.constant dense<0.000000e+00> : vector<8x64xf32>
    %15 = tpu.matmul %14, %1, %cst_13 {dimension_numbers = #tpu.dot_dimension_numbers<[1], [0], [0], [1], [0, 0, 1, 1], [], []>} : vector<8x64xf32>, vector<64x64xf32>, vector<8x64xf32> -> vector<8x64xf32>
    %16 = arith.maximumf %12, %15 : vector<8x64xf32>
    %c0_14 = arith.constant 0 : index
    %c0_15 = arith.constant 0 : index
    %17 = vector.load %arg4[%c0_14, %c0_15] : memref<8x1xf32, #tpu.memory_space<vmem>>, vector<8x1xf32>
    %18 = vector.broadcast %17 : vector<8x1xf32> to vector<8x64xf32>
    %19 = arith.addf %16, %18 : vector<8x64xf32>
    %cst_16 = arith.constant 0.000000e+00 : f32
    %20 = vector.broadcast %cst_16 : f32 to vector<8x64xf32>
    %21 = arith.cmpf ogt, %19, %20 : vector<8x64xf32>
    %cst_17 = arith.constant 0.00999999977 : f32
    %22 = vector.broadcast %cst_17 : f32 to vector<8x64xf32>
    %23 = arith.mulf %22, %19 : vector<8x64xf32>
    %24 = arith.select %21, %19, %23 : vector<8x64xi1>, vector<8x64xf32>
    %c0_18 = arith.constant 0 : index
    %c0_19 = arith.constant 0 : index
    %c0_20 = arith.constant 0 : index
    %25 = vector.load %arg5[%c0_18, %c0_19, %c0_20] : memref<1x8x64xf32, #tpu.memory_space<vmem>>, vector<1x8x64xf32>
    %26 = vector.shape_cast %25 : vector<1x8x64xf32> to vector<8x64xf32>
    %27 = vector.shape_cast %24 : vector<8x64xf32> to vector<1x8x64xf32>
    tpu.vector_store %arg5[%c0_18, %c0_19, %c0_20], %27 {strides = array<i32>} : memref<1x8x64xf32, #tpu.memory_space<vmem>>, vector<1x8x64xf32>,
    %cst_21 = arith.constant dense<0.000000e+00> : vector<8xf32>
    %28 = vector.multi_reduction <add>, %24, %cst_21 [1] : vector<8x64xf32> to vector<8xf32>
    %29 = vector.shape_cast %28 : vector<8xf32> to vector<8x1xf32>
    %cst_22 = arith.constant 1.562500e-02 : f32
    %30 = vector.broadcast %cst_22 : f32 to vector<8x1xf32>
    %31 = arith.mulf %29, %30 : vector<8x1xf32>
    %32 = vector.broadcast %31 : vector<8x1xf32> to vector<8x64xf32>
    %33 = arith.subf %24, %32 : vector<8x64xf32>
    %c0_23 = arith.constant 0 : index
    %c0_24 = arith.constant 0 : index
    %c0_25 = arith.constant 0 : index
    %c0_26 = arith.constant 0 : index
    %34 = vector.load %arg6[%c0_23, %c0_24, %c0_25, %c0_26] : memref<1x1x8x1xf32, #tpu.memory_space<vmem>>, vector<1x1x8x1xf32>
    %35 = vector.shape_cast %34 : vector<1x1x8x1xf32> to vector<8x1xf32>
    %36 = vector.shape_cast %29 : vector<8x1xf32> to vector<1x1x8x1xf32>
    tpu.vector_store %arg6[%c0_23, %c0_24, %c0_25, %c0_26], %36 {strides = array<i32>} : memref<1x1x8x1xf32, #tpu.memory_space<vmem>>, vector<1x1x8x1xf32>,
    %37 = arith.mulf %33, %33 : vector<8x64xf32>
    %cst_27 = arith.constant dense<0.000000e+00> : vector<8xf32>
    %38 = vector.multi_reduction <add>, %37, %cst_27 [1] : vector<8x64xf32> to vector<8xf32>
    %39 = vector.shape_cast %38 : vector<8xf32> to vector<8x1xf32>
    %c0_28 = arith.constant 0 : index
    %c0_29 = arith.constant 0 : index
    %c0_30 = arith.constant 0 : index
    %c0_31 = arith.constant 0 : index
    %40 = vector.load %arg7[%c0_28, %c0_29, %c0_30, %c0_31] : memref<1x1x8x1xf32, #tpu.memory_space<vmem>>, vector<1x1x8x1xf32>
    %41 = vector.shape_cast %40 : vector<1x1x8x1xf32> to vector<8x1xf32>
    %42 = vector.shape_cast %39 : vector<8x1xf32> to vector<1x1x8x1xf32>
    tpu.vector_store %arg7[%c0_28, %c0_29, %c0_30, %c0_31], %42 {strides = array<i32>} : memref<1x1x8x1xf32, #tpu.memory_space<vmem>>, vector<1x1x8x1xf32>,
    return
  }
  func.func @transform_0(%arg0: i32, %arg1: i32) -> (i32, i32, i32) {
    %c0_i32 = arith.constant 0 : i32
    %c0_i32_0 = arith.constant 0 : i32
    return %arg0, %c0_i32, %arg1 : i32, i32, i32
  }
  func.func @transform_1(%arg0: i32, %arg1: i32) -> (i32, i32, i32) {
    %c0_i32 = arith.constant 0 : i32
    %c0_i32_0 = arith.constant 0 : i32
    %c0_i32_1 = arith.constant 0 : i32
    %c0_i32_2 = arith.constant 0 : i32
    return %c0_i32, %c0_i32_0, %c0_i32_1 : i32, i32, i32
  }
  func.func @transform_2(%arg0: i32, %arg1: i32) -> (i32, i32) {
    %c0_i32 = arith.constant 0 : i32
    %c0_i32_0 = arith.constant 0 : i32
    %c0_i32_1 = arith.constant 0 : i32
    return %c0_i32, %c0_i32_0 : i32, i32
  }
  func.func @transform_3(%arg0: i32, %arg1: i32) -> (i32, i32, i32) {
    %c0_i32 = arith.constant 0 : i32
    %c0_i32_0 = arith.constant 0 : i32
    return %arg0, %c0_i32, %arg1 : i32, i32, i32
  }
  func.func @transform_4(%arg0: i32, %arg1: i32) -> (i32, i32, i32, i32) {
    %c0_i32 = arith.constant 0 : i32
    %c0_i32_0 = arith.constant 0 : i32
    %c0_i32_1 = arith.constant 0 : i32
    return %arg0, %arg1, %c0_i32, %c0_i32_0 : i32, i32, i32, i32
  }
  func.func @transform_5(%arg0: i32, %arg1: i32) -> (i32, i32, i32, i32) {
    %c0_i32 = arith.constant 0 : i32
    %c0_i32_0 = arith.constant 0 : i32
    %c0_i32_1 = arith.constant 0 : i32
    return %arg0, %arg1, %c0_i32, %c0_i32_0 : i32, i32, i32, i32
  }
}

module attributes {stable_mosaic.version = 11 : i64} {
  func.func @_bn_apply_kernel(%arg0: i32, %arg1: i32, %arg2: memref<1x8x64xf32, #tpu.memory_space<vmem>>, %arg3: memref<8x1xf32, #tpu.memory_space<vmem>>, %arg4: memref<8x1xf32, #tpu.memory_space<vmem>>, %arg5: memref<1x8x64xf32, #tpu.memory_space<vmem>>) attributes {dimension_semantics = [#tpu.dimension_semantics<parallel>, #tpu.dimension_semantics<parallel>], iteration_bounds = array<i64: 2, 1>, scalar_prefetch = 0 : i64, scratch_operands = 0 : i64, tpu.core_type = #tpu.core_type<tc>, window_params = [{transform_indices = @transform_0, window_bounds = array<i64: 1, 8, 64>}, {pipeline_mode = #tpu.pipeline_mode<synchronous>, transform_indices = @transform_1, window_bounds = array<i64: 8, 1>}, {pipeline_mode = #tpu.pipeline_mode<synchronous>, transform_indices = @transform_2, window_bounds = array<i64: 8, 1>}, {transform_indices = @transform_3, window_bounds = array<i64: 1, 8, 64>}]} {
    %c0 = arith.constant 0 : index
    %c0_0 = arith.constant 0 : index
    %c0_1 = arith.constant 0 : index
    %0 = vector.load %arg2[%c0, %c0_0, %c0_1] : memref<1x8x64xf32, #tpu.memory_space<vmem>>, vector<1x8x64xf32>
    %1 = vector.shape_cast %0 : vector<1x8x64xf32> to vector<8x64xf32>
    %c0_2 = arith.constant 0 : index
    %c0_3 = arith.constant 0 : index
    %2 = vector.load %arg3[%c0_2, %c0_3] : memref<8x1xf32, #tpu.memory_space<vmem>>, vector<8x1xf32>
    %3 = vector.broadcast %2 : vector<8x1xf32> to vector<8x64xf32>
    %4 = arith.mulf %1, %3 : vector<8x64xf32>
    %c0_4 = arith.constant 0 : index
    %c0_5 = arith.constant 0 : index
    %5 = vector.load %arg4[%c0_4, %c0_5] : memref<8x1xf32, #tpu.memory_space<vmem>>, vector<8x1xf32>
    %6 = vector.broadcast %5 : vector<8x1xf32> to vector<8x64xf32>
    %7 = arith.addf %4, %6 : vector<8x64xf32>
    %c0_6 = arith.constant 0 : index
    %c0_7 = arith.constant 0 : index
    %c0_8 = arith.constant 0 : index
    %8 = vector.load %arg5[%c0_6, %c0_7, %c0_8] : memref<1x8x64xf32, #tpu.memory_space<vmem>>, vector<1x8x64xf32>
    %9 = vector.shape_cast %8 : vector<1x8x64xf32> to vector<8x64xf32>
    %10 = vector.shape_cast %7 : vector<8x64xf32> to vector<1x8x64xf32>
    tpu.vector_store %arg5[%c0_6, %c0_7, %c0_8], %10 {strides = array<i32>} : memref<1x8x64xf32, #tpu.memory_space<vmem>>, vector<1x8x64xf32>,
    return
  }
  func.func @transform_0(%arg0: i32, %arg1: i32) -> (i32, i32, i32) {
    %c0_i32 = arith.constant 0 : i32
    %c0_i32_0 = arith.constant 0 : i32
    return %arg0, %c0_i32, %arg1 : i32, i32, i32
  }
  func.func @transform_1(%arg0: i32, %arg1: i32) -> (i32, i32) {
    %c0_i32 = arith.constant 0 : i32
    %c0_i32_0 = arith.constant 0 : i32
    %c0_i32_1 = arith.constant 0 : i32
    return %c0_i32, %c0_i32_0 : i32, i32
  }
  func.func @transform_2(%arg0: i32, %arg1: i32) -> (i32, i32) {
    %c0_i32 = arith.constant 0 : i32
    %c0_i32_0 = arith.constant 0 : i32
    %c0_i32_1 = arith.constant 0 : i32
    return %c0_i32, %c0_i32_0 : i32, i32
  }
  func.func @transform_3(%arg0: i32, %arg1: i32) -> (i32, i32, i32) {
    %c0_i32 = arith.constant 0 : i32
    %c0_i32_0 = arith.constant 0 : i32
    return %arg0, %c0_i32, %arg1 : i32, i32, i32
  }
}

</mosaic_0001>

<llo_original>
// kernel: conv_net_forward.3
$region0: #{conv_net_forward.3}
  #allocation0 [shape = 'u32[]', space=smem, size = 0x4, offset = 0x4, fixed_abs, tag = 'smem constant byte address 0x4 - core index']
  #allocation1 [shape = 'u32[144,128]{1,0:T(1,128)}', space=vmem, size = 0x12000, scoped, tag = 'internal scratch']
  %s0 = inlined_call_operand.vmem [shape: f32[2,8,64], index: 0, kind: input, shape index: {}]
  %s1 = inlined_call_operand.vmem [shape: f32[8,1], index: 1, kind: input, shape index: {}]
  %s2 = inlined_call_operand.vmem [shape: f32[8,1], index: 2, kind: input, shape index: {}]
  %s3 = inlined_call_operand.vmem [shape: f32[2,8,64], index: 3, kind: output, shape index: {}]
  %s4 = sld [smem:[#allocation0]]
  $region45: #{conv_net_forward.3} parent=0
    _
  %s6 = ssub.s32 1, %s4
  %s7 = scalar_select 0, %s6, %s4
  loop: start=0, step=1, limit=4
  $region2: #{conv_net_forward.3} parent=0 // loop_pre_header
    _
  $region3: #{conv_net_forward.3} parent=0 // loop_header
    %s9 = sphi 0, %s13
    %p10 = scmp.ge.s32.totalorder %s9, 4
    %s16 = sphi 0, %s28
    %s17 = sphi 0, %s24
    %s18 = sphi 0, %s16
    %s19 = sphi 0, %s17
    %s20 = sphi 0, %s18
    %s21 = sphi 0, %s19
    %s33 = sphi 0, %s35
    %s36 = sphi 0, %s33
    %s37 = sphi 0, %s36
    %s53 = sphi 0, %s37
    %s57 = sphi 0, %s57
    %s59 = sphi 0, %s57
    %s60 = sphi 0, %s59
    %s74 = sphi 0, %s60
    %s78 = sphi 0, %s78
    %s80 = sphi 0, %s78
    %s81 = sphi 0, %s80
    %s95 = sphi 0, %s81
    %s103 = sphi 0, %s105
    %s106 = sphi 0, %s103
    %s107 = sphi 0, %s106
    %s123 = sphi 0, %s107
  $region4: #{conv_net_forward.3} parent=0 // loop_header_branch
    %12 = sbr.rel (%p10) target = $region8
  $region5: #{conv_net_forward.3} parent=0 // loop_body
    %s14 = ssub.s32 %s9, 1
    %s15 = ssub.s32 %s9, 2
    %s22 = sadd.s32 1, %s17
    %p23 = scmp.ge.s32.totalorder %s22, 1
    %s24 = scalar_select %p23, 0, %s22
    %s25 = sadd.s32 1, %s16
    %s26 = scalar_select %p23, %s25, %s16
    %p27 = scmp.ge.s32.totalorder %s26, 2
    %s28 = scalar_select %p27, 0, %s26
    %s29 = ssub.s32 %s16, %s28
    %s30 = ssub.s32 %s17, %s24
    %s31 = sor.u32 %s29, %s30
    %p32 = scmp.eq.s32.totalorder %s31, 0
    %s34 = sadd.s32 %s33, 1
    %s35 = scalar_select %p32, %s33, %s34
    %p38 = pneg %p32
    %p39 = scmp.eq.s32.totalorder %s9, 1
    %p40 = por %p38, %p39
    %p41 = scmp.ne.s32.totalorder %s33, %s36
    %p42 = scmp.eq.s32.totalorder %s9, 0
    %p43 = por %p41, %p42
    %p44 = scmp.ne.s32.totalorder %s33, %s36
    %p45 = scmp.eq.s32.totalorder %s14, 1
    %p46 = por %p44, %p45
    %p47 = scmp.ne.s32.totalorder %s36, %s37
    %p48 = scmp.eq.s32.totalorder %s14, 0
    %p49 = por %p47, %p48
    %p50 = scmp.ne.s32.totalorder %s36, %s37
    %p51 = scmp.eq.s32.totalorder %s15, 1
    %p52 = por %p50, %p51
    %p54 = scmp.ne.s32.totalorder %s37, %s53
    %p55 = scmp.eq.s32.totalorder %s15, 0
    %p56 = por %p54, %p55
    %s58 = sadd.s32 %s57, 1
    %p61 = scmp.eq.s32.totalorder %s9, 1
    %p62 = scmp.ne.s32.totalorder %s57, %s59
    %p63 = scmp.eq.s32.totalorder %s9, 0
    %p64 = por %p62, %p63
    %p65 = scmp.ne.s32.totalorder %s57, %s59
    %p66 = scmp.eq.s32.totalorder %s14, 1
    %p67 = por %p65, %p66
    %p68 = scmp.ne.s32.totalorder %s59, %s60
    %p69 = scmp.eq.s32.totalorder %s14, 0
    %p70 = por %p68, %p69
    %p71 = scmp.ne.s32.totalorder %s59, %s60
    %p72 = scmp.eq.s32.totalorder %s15, 1
    %p73 = por %p71, %p72
    %p75 = scmp.ne.s32.totalorder %s60, %s74
    %p76 = scmp.eq.s32.totalorder %s15, 0
    %p77 = por %p75, %p76
    %s79 = sadd.s32 %s78, 1
    %p82 = scmp.eq.s32.totalorder %s9, 1
    %p83 = scmp.ne.s32.totalorder %s78, %s80
    %p84 = scmp.eq.s32.totalorder %s9, 0
    %p85 = por %p83, %p84
    %p86 = scmp.ne.s32.totalorder %s78, %s80
    %p87 = scmp.eq.s32.totalorder %s14, 1
    %p88 = por %p86, %p87
    %p89 = scmp.ne.s32.totalorder %s80, %s81
    %p90 = scmp.eq.s32.totalorder %s14, 0
    %p91 = por %p89, %p90
    %p92 = scmp.ne.s32.totalorder %s80, %s81
    %p93 = scmp.eq.s32.totalorder %s15, 1
    %p94 = por %p92, %p93
    %p96 = scmp.ne.s32.totalorder %s81, %s95
    %p97 = scmp.eq.s32.totalorder %s15, 0
    %p98 = por %p96, %p97
    %s99 = ssub.s32 %s16, %s28
    %s100 = ssub.s32 %s17, %s24
    %s101 = sor.u32 %s99, %s100
    %p102 = scmp.eq.s32.totalorder %s101, 0
    %s104 = sadd.s32 %s103, 1
    %s105 = scalar_select %p102, %s103, %s104
    %p108 = pneg %p102
    %p109 = scmp.eq.s32.totalorder %s9, 1
    %p110 = por %p108, %p109
    %p111 = scmp.ne.s32.totalorder %s103, %s106
    %p112 = scmp.eq.s32.totalorder %s9, 0
    %p113 = por %p111, %p112
    %p114 = scmp.ne.s32.totalorder %s103, %s106
    %p115 = scmp.eq.s32.totalorder %s14, 1
    %p116 = por %p114, %p115
    %p117 = scmp.ne.s32.totalorder %s106, %s107
    %p118 = scmp.eq.s32.totalorder %s14, 0
    %p119 = por %p117, %p118
    %p120 = scmp.ne.s32.totalorder %s106, %s107
    %p121 = scmp.eq.s32.totalorder %s15, 1
    %p122 = por %p120, %p121
    %p124 = scmp.ne.s32.totalorder %s107, %s123
    %p125 = scmp.eq.s32.totalorder %s15, 0
    %p126 = por %p124, %p125
    %p127 = scmp.le.s32.totalorder 1, %s9
    %p128 = scmp.lt.s32.totalorder %s9, 3
    %p129 = pnand %p127, %p128
    %p130 = pneg %p129
    // Predicated region
    $region9: #{conv_net_forward.3} parent=5 // pred_check
      _
    $region10: #{conv_net_forward.3} parent=5 // pred_check_branch
      %132 = sbr.rel (%p129) target = $region12
    $region11: #{conv_net_forward.3} parent=5 // pred_region
      %s133 = ssub.s32 %s9, 1
      // Predicated region
      $region13: #{conv_net_forward.3} parent=11 // pred_check
        %p134 = pneg %p70
      $region14: #{conv_net_forward.3} parent=11 // pred_check_branch
        %136 = sbr.rel (%p134) target = $region16
      $region15: #{conv_net_forward.3} parent=11 // pred_region
        _
      $region16: #{conv_net_forward.3} parent=11 // pred_fallthru
        _
      // Predicated region
      $region17: #{conv_net_forward.3} parent=11 // pred_check
        %p137 = pneg %p91
      $region18: #{conv_net_forward.3} parent=11 // pred_check_branch
        %139 = sbr.rel (%p137) target = $region20
      $region19: #{conv_net_forward.3} parent=11 // pred_region
        _
      $region20: #{conv_net_forward.3} parent=11 // pred_fallthru
        _
    $region12: #{conv_net_forward.3} parent=5 // pred_fallthru
      _
    %p140 = scmp.lt.s32.totalorder %s9, 2
    // Predicated region
    $region21: #{conv_net_forward.3} parent=5 // pred_check
      %p141 = pneg %p140
    $region22: #{conv_net_forward.3} parent=5 // pred_check_branch
      %143 = sbr.rel (%p141) target = $region24
    $region23: #{conv_net_forward.3} parent=5 // pred_region
      // Predicated region
      $region25: #{conv_net_forward.3} parent=23 // pred_check
        %p144 = pneg %p43
      $region26: #{conv_net_forward.3} parent=23 // pred_check_branch
        %146 = sbr.rel (%p144) target = $region28
      $region27: #{conv_net_forward.3} parent=23 // pred_region
        %p147 = scmp.lt.s32.totalorder %s16, 1
        %s148 = scalar_select %p147, %s16, 1
        %p149 = scmp.lt.s32.totalorder %s17, 0
        %s150 = scalar_select %p149, %s17, 0
        %s151 = sadd.s32 %s150, %s148
        %s152 = smul.addr %s151, 8
        %s153 = scalar_lea.vmem %s0, %s152
      $region28: #{conv_net_forward.3} parent=23 // pred_fallthru
        _
    $region24: #{conv_net_forward.3} parent=5 // pred_fallthru
      _
    %p154 = scmp.le.s32.totalorder 1, %s9
    %p155 = scmp.lt.s32.totalorder %s9, 3
    %p156 = pnand %p154, %p155
    %p157 = pneg %p156
    // Predicated region
    $region29: #{conv_net_forward.3} parent=5 // pred_check
      _
    $region30: #{conv_net_forward.3} parent=5 // pred_check_branch
      %159 = sbr.rel (%p156) target = $region32
    $region31: #{conv_net_forward.3} parent=5 // pred_region
      %s160 = ssub.s32 %s9, 1
      %p161 = scmp.lt.s32.totalorder %s18, 1
      %s162 = scalar_select %p161, %s18, 1
      %p163 = scmp.lt.s32.totalorder %s19, 0
      %s164 = scalar_select %p163, %s19, 0
      %s165 = sadd.s32 %s164, %s162
      %s166 = smul.addr %s165, 8
      %s167 = scalar_lea.vmem %s0, %s166
      %p168 = pneg %p49
      %p169 = pneg %p46
      %p170 = pneg %p70
      %p171 = pneg %p67
      %p172 = pneg %p91
      %p173 = pneg %p88
      %p174 = pneg %p119
      %p175 = pneg %p116
      %p176 = scmp.lt.s32.totalorder %s18, 1
      %s177 = scalar_select %p176, %s18, 1
      %p178 = scmp.lt.s32.totalorder %s19, 0
      %s179 = scalar_select %p178, %s19, 0
      %s180 = sadd.s32 %s179, %s177
      %s181 = smul.addr %s180, 8
      %s182 = scalar_lea.vmem %s3, %s181
      %p183 = scmp.lt.s32.totalorder %s18, 1
      %s184 = scalar_select %p183, %s18, 1
      %p185 = scmp.lt.s32.totalorder %s19, 0
      %s186 = scalar_select %p185, %s19, 0
      %s187 = sadd.s32 %s186, %s184
      %s188 = smul.addr %s187, 8
      %s189 = scalar_lea.vmem %s0, %s188
      %p190 = scmp.lt.s32.totalorder %s18, 1
      %s191 = scalar_select %p190, %s18, 1
      %p192 = scmp.lt.s32.totalorder %s19, 0
      %s193 = scalar_select %p192, %s19, 0
      %s194 = sadd.s32 %s193, %s191
      %s195 = smul.addr %s194, 8
      %s196 = scalar_lea.vmem %s3, %s195
      %v197 = vld [vmem:[%s189] sm:$0xff]
      %v198 = vld [vmem:[%s1] sm:$0xff]
      %200 = vset.pattern.permute.xlu0 0
      %201 = vperm.xlu0 %200, %v198
      %v202 = vpop.permute.xlu0 %201
      %v204 = vmul.f32 %v197, %v202
      %v205 = vld [vmem:[%s2] sm:$0xff]
      %207 = vset.pattern.permute.xlu0 0
      %208 = vperm.xlu0 %207, %v205
      %v209 = vpop.permute.xlu0 %208
      %v211 = vadd.f32 %v204, %v209
      %vm212 = vcmask 523264
      %213 = vst.msk [vmem:[%s196] sm:$0xff] %vm212, %v211
      %p214 = scmp.lt.s32.totalorder %s18, 1
      %s215 = scalar_select %p214, %s18, 1
      %p216 = scmp.lt.s32.totalorder %s19, 0
      %s217 = scalar_select %p216, %s19, 0
      %s218 = sadd.s32 %s217, %s215
      %s219 = smul.addr %s218, 8
      %s220 = scalar_lea.vmem %s3, %s219
      // Predicated region
      $region33: #{conv_net_forward.3} parent=31 // pred_check
        %p221 = pneg %p116
      $region34: #{conv_net_forward.3} parent=31 // pred_check_branch
        %223 = sbr.rel (%p221) target = $region36
      $region35: #{conv_net_forward.3} parent=31 // pred_region
        _
      $region36: #{conv_net_forward.3} parent=31 // pred_fallthru
        _
    $region32: #{conv_net_forward.3} parent=5 // pred_fallthru
      _
    %p224 = scmp.le.s32.totalorder 2, %s9
    // Predicated region
    $region37: #{conv_net_forward.3} parent=5 // pred_check
      %p225 = pneg %p224
    $region38: #{conv_net_forward.3} parent=5 // pred_check_branch
      %227 = sbr.rel (%p225) target = $region40
    $region39: #{conv_net_forward.3} parent=5 // pred_region
      %s228 = ssub.s32 %s9, 2
      // Predicated region
      $region41: #{conv_net_forward.3} parent=39 // pred_check
        %p229 = pneg %p122
      $region42: #{conv_net_forward.3} parent=39 // pred_check_branch
        %231 = sbr.rel (%p229) target = $region44
      $region43: #{conv_net_forward.3} parent=39 // pred_region
        %p232 = scmp.lt.s32.totalorder %s20, 1
        %s233 = scalar_select %p232, %s20, 1
        %p234 = scmp.lt.s32.totalorder %s21, 0
        %s235 = scalar_select %p234, %s21, 0
        %s236 = sadd.s32 %s235, %s233
        %s237 = smul.addr %s236, 8
        %s238 = scalar_lea.vmem %s3, %s237
      $region44: #{conv_net_forward.3} parent=39 // pred_fallthru
        _
    $region40: #{conv_net_forward.3} parent=5 // pred_fallthru
      _
  $region6: #{conv_net_forward.3} parent=0 // loop_footer
    %s13 = sadd.s32 1, %s9
  $region7: #{conv_net_forward.3} parent=0 // loop_footer_branch
    %8 = sbr.rel target = $region3
  $region8: #{conv_net_forward.3} parent=0 // loop_exit
    _

// kernel: conv_net_forward.2
$region0: #{conv_net_forward.2}
  #allocation0 [shape = 'u32[]', space=smem, size = 0x4, offset = 0x4, fixed_abs, tag = 'smem constant byte address 0x4 - core index']
  #allocation1 [shape = 'u32[144,128]{1,0:T(1,128)}', space=vmem, size = 0x12000, scoped, tag = 'internal scratch']
  %s0 = inlined_call_operand.vmem [shape: f32[2,64,64], index: 0, kind: input, shape index: {}]
  %s1 = inlined_call_operand.vmem [shape: f32[4,8,64], index: 1, kind: input, shape index: {}]
  %s2 = inlined_call_operand.vmem [shape: f32[8,1], index: 2, kind: input, shape index: {}]
  %s3 = inlined_call_operand.vmem [shape: f32[2,8,64], index: 3, kind: output, shape index: {0}]
  %s4 = inlined_call_operand.vmem [shape: f32[2,1,8,1], index: 4, kind: output, shape index: {1}]
  %s5 = inlined_call_operand.vmem [shape: f32[2,1,8,1], index: 5, kind: output, shape index: {2}]
  %6 = xla_tuple %s3, %s4, %s5
  %s7 = sld [smem:[#allocation0]]
  $region61: #{conv_net_forward.2} parent=0
    _
  %s9 = ssub.s32 1, %s7
  %s10 = scalar_select 0, %s9, %s7
  loop: start=0, step=1, limit=4
  $region2: #{conv_net_forward.2} parent=0 // loop_pre_header
    _
  $region3: #{conv_net_forward.2} parent=0 // loop_header
    %s12 = sphi 0, %s16
    %p13 = scmp.ge.s32.totalorder %s12, 4
    %s19 = sphi 0, %s31
    %s20 = sphi 0, %s27
    %s21 = sphi 0, %s19
    %s22 = sphi 0, %s20
    %s23 = sphi 0, %s21
    %s24 = sphi 0, %s22
    %s36 = sphi 0, %s38
    %s39 = sphi 0, %s36
    %s40 = sphi 0, %s39
    %s56 = sphi 0, %s40
    %s60 = sphi 0, %s60
    %s62 = sphi 0, %s60
    %s63 = sphi 0, %s62
    %s77 = sphi 0, %s63
    %s81 = sphi 0, %s81
    %s83 = sphi 0, %s81
    %s84 = sphi 0, %s83
    %s98 = sphi 0, %s84
    %s106 = sphi 0, %s108
    %s109 = sphi 0, %s106
    %s110 = sphi 0, %s109
    %s126 = sphi 0, %s110
    %s134 = sphi 0, %s136
    %s137 = sphi 0, %s134
    %s138 = sphi 0, %s137
    %s154 = sphi 0, %s138
    %s162 = sphi 0, %s164
    %s165 = sphi 0, %s162
    %s166 = sphi 0, %s165
    %s182 = sphi 0, %s166
  $region4: #{conv_net_forward.2} parent=0 // loop_header_branch
    %15 = sbr.rel (%p13) target = $region8
  $region5: #{conv_net_forward.2} parent=0 // loop_body
    %s17 = ssub.s32 %s12, 1
    %s18 = ssub.s32 %s12, 2
    %s25 = sadd.s32 1, %s20
    %p26 = scmp.ge.s32.totalorder %s25, 1
    %s27 = scalar_select %p26, 0, %s25
    %s28 = sadd.s32 1, %s19
    %s29 = scalar_select %p26, %s28, %s19
    %p30 = scmp.ge.s32.totalorder %s29, 2
    %s31 = scalar_select %p30, 0, %s29
    %s32 = ssub.s32 %s19, %s31
    %s33 = ssub.s32 %s20, %s27
    %s34 = sor.u32 %s32, %s33
    %p35 = scmp.eq.s32.totalorder %s34, 0
    %s37 = sadd.s32 %s36, 1
    %s38 = scalar_select %p35, %s36, %s37
    %p41 = pneg %p35
    %p42 = scmp.eq.s32.totalorder %s12, 1
    %p43 = por %p41, %p42
    %p44 = scmp.ne.s32.totalorder %s36, %s39
    %p45 = scmp.eq.s32.totalorder %s12, 0
    %p46 = por %p44, %p45
    %p47 = scmp.ne.s32.totalorder %s36, %s39
    %p48 = scmp.eq.s32.totalorder %s17, 1
    %p49 = por %p47, %p48
    %p50 = scmp.ne.s32.totalorder %s39, %s40
    %p51 = scmp.eq.s32.totalorder %s17, 0
    %p52 = por %p50, %p51
    %p53 = scmp.ne.s32.totalorder %s39, %s40
    %p54 = scmp.eq.s32.totalorder %s18, 1
    %p55 = por %p53, %p54
    %p57 = scmp.ne.s32.totalorder %s40, %s56
    %p58 = scmp.eq.s32.totalorder %s18, 0
    %p59 = por %p57, %p58
    %s61 = sadd.s32 %s60, 1
    %p64 = scmp.eq.s32.totalorder %s12, 1
    %p65 = scmp.ne.s32.totalorder %s60, %s62
    %p66 = scmp.eq.s32.totalorder %s12, 0
    %p67 = por %p65, %p66
    %p68 = scmp.ne.s32.totalorder %s60, %s62
    %p69 = scmp.eq.s32.totalorder %s17, 1
    %p70 = por %p68, %p69
    %p71 = scmp.ne.s32.totalorder %s62, %s63
    %p72 = scmp.eq.s32.totalorder %s17, 0
    %p73 = por %p71, %p72
    %p74 = scmp.ne.s32.totalorder %s62, %s63
    %p75 = scmp.eq.s32.totalorder %s18, 1
    %p76 = por %p74, %p75
    %p78 = scmp.ne.s32.totalorder %s63, %s77
    %p79 = scmp.eq.s32.totalorder %s18, 0
    %p80 = por %p78, %p79
    %s82 = sadd.s32 %s81, 1
    %p85 = scmp.eq.s32.totalorder %s12, 1
    %p86 = scmp.ne.s32.totalorder %s81, %s83
    %p87 = scmp.eq.s32.totalorder %s12, 0
    %p88 = por %p86, %p87
    %p89 = scmp.ne.s32.totalorder %s81, %s83
    %p90 = scmp.eq.s32.totalorder %s17, 1
    %p91 = por %p89, %p90
    %p92 = scmp.ne.s32.totalorder %s83, %s84
    %p93 = scmp.eq.s32.totalorder %s17, 0
    %p94 = por %p92, %p93
    %p95 = scmp.ne.s32.totalorder %s83, %s84
    %p96 = scmp.eq.s32.totalorder %s18, 1
    %p97 = por %p95, %p96
    %p99 = scmp.ne.s32.totalorder %s84, %s98
    %p100 = scmp.eq.s32.totalorder %s18, 0
    %p101 = por %p99, %p100
    %s102 = ssub.s32 %s19, %s31
    %s103 = ssub.s32 %s20, %s27
    %s104 = sor.u32 %s102, %s103
    %p105 = scmp.eq.s32.totalorder %s104, 0
    %s107 = sadd.s32 %s106, 1
    %s108 = scalar_select %p105, %s106, %s107
    %p111 = pneg %p105
    %p112 = scmp.eq.s32.totalorder %s12, 1
    %p113 = por %p111, %p112
    %p114 = scmp.ne.s32.totalorder %s106, %s109
    %p115 = scmp.eq.s32.totalorder %s12, 0
    %p116 = por %p114, %p115
    %p117 = scmp.ne.s32.totalorder %s106, %s109
    %p118 = scmp.eq.s32.totalorder %s17, 1
    %p119 = por %p117, %p118
    %p120 = scmp.ne.s32.totalorder %s109, %s110
    %p121 = scmp.eq.s32.totalorder %s17, 0
    %p122 = por %p120, %p121
    %p123 = scmp.ne.s32.totalorder %s109, %s110
    %p124 = scmp.eq.s32.totalorder %s18, 1
    %p125 = por %p123, %p124
    %p127 = scmp.ne.s32.totalorder %s110, %s126
    %p128 = scmp.eq.s32.totalorder %s18, 0
    %p129 = por %p127, %p128
    %s130 = ssub.s32 %s19, %s31
    %s131 = ssub.s32 %s20, %s27
    %s132 = sor.u32 %s130, %s131
    %p133 = scmp.eq.s32.totalorder %s132, 0
    %s135 = sadd.s32 %s134, 1
    %s136 = scalar_select %p133, %s134, %s135
    %p139 = pneg %p133
    %p140 = scmp.eq.s32.totalorder %s12, 1
    %p141 = por %p139, %p140
    %p142 = scmp.ne.s32.totalorder %s134, %s137
    %p143 = scmp.eq.s32.totalorder %s12, 0
    %p144 = por %p142, %p143
    %p145 = scmp.ne.s32.totalorder %s134, %s137
    %p146 = scmp.eq.s32.totalorder %s17, 1
    %p147 = por %p145, %p146
    %p148 = scmp.ne.s32.totalorder %s137, %s138
    %p149 = scmp.eq.s32.totalorder %s17, 0
    %p150 = por %p148, %p149
    %p151 = scmp.ne.s32.totalorder %s137, %s138
    %p152 = scmp.eq.s32.totalorder %s18, 1
    %p153 = por %p151, %p152
    %p155 = scmp.ne.s32.totalorder %s138, %s154
    %p156 = scmp.eq.s32.totalorder %s18, 0
    %p157 = por %p155, %p156
    %s158 = ssub.s32 %s19, %s31
    %s159 = ssub.s32 %s20, %s27
    %s160 = sor.u32 %s158, %s159
    %p161 = scmp.eq.s32.totalorder %s160, 0
    %s163 = sadd.s32 %s162, 1
    %s164 = scalar_select %p161, %s162, %s163
    %p167 = pneg %p161
    %p168 = scmp.eq.s32.totalorder %s12, 1
    %p169 = por %p167, %p168
    %p170 = scmp.ne.s32.totalorder %s162, %s165
    %p171 = scmp.eq.s32.totalorder %s12, 0
    %p172 = por %p170, %p171
    %p173 = scmp.ne.s32.totalorder %s162, %s165
    %p174 = scmp.eq.s32.totalorder %s17, 1
    %p175 = por %p173, %p174
    %p176 = scmp.ne.s32.totalorder %s165, %s166
    %p177 = scmp.eq.s32.totalorder %s17, 0
    %p178 = por %p176, %p177
    %p179 = scmp.ne.s32.totalorder %s165, %s166
    %p180 = scmp.eq.s32.totalorder %s18, 1
    %p181 = por %p179, %p180
    %p183 = scmp.ne.s32.totalorder %s166, %s182
    %p184 = scmp.eq.s32.totalorder %s18, 0
    %p185 = por %p183, %p184
    %p186 = scmp.le.s32.totalorder 1, %s12
    %p187 = scmp.lt.s32.totalorder %s12, 3
    %p188 = pnand %p186, %p187
    %p189 = pneg %p188
    // Predicated region
    $region9: #{conv_net_forward.2} parent=5 // pred_check
      _
    $region10: #{conv_net_forward.2} parent=5 // pred_check_branch
      %191 = sbr.rel (%p188) target = $region12
    $region11: #{conv_net_forward.2} parent=5 // pred_region
      %s192 = ssub.s32 %s12, 1
      // Predicated region
      $region13: #{conv_net_forward.2} parent=11 // pred_check
        %p193 = pneg %p73
      $region14: #{conv_net_forward.2} parent=11 // pred_check_branch
        %195 = sbr.rel (%p193) target = $region16
      $region15: #{conv_net_forward.2} parent=11 // pred_region
        _
      $region16: #{conv_net_forward.2} parent=11 // pred_fallthru
        _
      // Predicated region
      $region17: #{conv_net_forward.2} parent=11 // pred_check
        %p196 = pneg %p94
      $region18: #{conv_net_forward.2} parent=11 // pred_check_branch
        %198 = sbr.rel (%p196) target = $region20
      $region19: #{conv_net_forward.2} parent=11 // pred_region
        _
      $region20: #{conv_net_forward.2} parent=11 // pred_fallthru
        _
    $region12: #{conv_net_forward.2} parent=5 // pred_fallthru
      _
    %p199 = scmp.lt.s32.totalorder %s12, 2
    // Predicated region
    $region21: #{conv_net_forward.2} parent=5 // pred_check
      %p200 = pneg %p199
    $region22: #{conv_net_forward.2} parent=5 // pred_check_branch
      %202 = sbr.rel (%p200) target = $region24
    $region23: #{conv_net_forward.2} parent=5 // pred_region
      // Predicated region
      $region25: #{conv_net_forward.2} parent=23 // pred_check
        %p203 = pneg %p46
      $region26: #{conv_net_forward.2} parent=23 // pred_check_branch
        %205 = sbr.rel (%p203) target = $region28
      $region27: #{conv_net_forward.2} parent=23 // pred_region
        %p206 = scmp.lt.s32.totalorder %s19, 1
        %s207 = scalar_select %p206, %s19, 1
        %p208 = scmp.lt.s32.totalorder %s20, 0
        %s209 = scalar_select %p208, %s20, 0
        %s210 = smul.addr %s207, 8
        %s211 = sadd.s32 %s209, %s210
        %s212 = smul.addr %s211, 8
        %s213 = scalar_lea.vmem %s0, %s212
      $region28: #{conv_net_forward.2} parent=23 // pred_fallthru
        _
    $region24: #{conv_net_forward.2} parent=5 // pred_fallthru
      _
    %p214 = scmp.le.s32.totalorder 1, %s12
    %p215 = scmp.lt.s32.totalorder %s12, 3
    %p216 = pnand %p214, %p215
    %p217 = pneg %p216
    // Predicated region
    $region29: #{conv_net_forward.2} parent=5 // pred_check
      _
    $region30: #{conv_net_forward.2} parent=5 // pred_check_branch
      %219 = sbr.rel (%p216) target = $region32
    $region31: #{conv_net_forward.2} parent=5 // pred_region
      %s220 = ssub.s32 %s12, 1
      %p221 = scmp.lt.s32.totalorder %s21, 1
      %s222 = scalar_select %p221, %s21, 1
      %p223 = scmp.lt.s32.totalorder %s22, 0
      %s224 = scalar_select %p223, %s22, 0
      %s225 = smul.addr %s222, 8
      %s226 = sadd.s32 %s224, %s225
      %s227 = smul.addr %s226, 8
      %s228 = scalar_lea.vmem %s0, %s227
      %p229 = pneg %p52
      %p230 = pneg %p49
      %p231 = pneg %p73
      %p232 = pneg %p70
      %p233 = pneg %p94
      %p234 = pneg %p91
      %p235 = pneg %p122
      %p236 = pneg %p119
      %p237 = scmp.lt.s32.totalorder %s21, 1
      %s238 = scalar_select %p237, %s21, 1
      %p239 = scmp.lt.s32.totalorder %s22, 0
      %s240 = scalar_select %p239, %s22, 0
      %s241 = sadd.s32 %s240, %s238
      %s242 = smul.addr %s241, 8
      %s243 = scalar_lea.vmem %s3, %s242
      %p244 = pneg %p150
      %p245 = pneg %p147
      %p246 = scmp.lt.s32.totalorder %s21, 1
      %s247 = scalar_select %p246, %s21, 1
      %p248 = scmp.lt.s32.totalorder %s22, 0
      %s249 = scalar_select %p248, %s22, 0
      %s250 = sadd.s32 %s249, %s247
      %s251 = smul.addr %s250, 8
      %s252 = scalar_lea.vmem %s4, %s251
      %p253 = pneg %p178
      %p254 = pneg %p175
      %p255 = scmp.lt.s32.totalorder %s21, 1
      %s256 = scalar_select %p255, %s21, 1
      %p257 = scmp.lt.s32.totalorder %s22, 0
      %s258 = scalar_select %p257, %s22, 0
      %s259 = sadd.s32 %s258, %s256
      %s260 = smul.addr %s259, 8
      %s261 = scalar_lea.vmem %s5, %s260
      %p262 = scmp.lt.s32.totalorder %s21, 1
      %s263 = scalar_select %p262, %s21, 1
      %p264 = scmp.lt.s32.totalorder %s22, 0
      %s265 = scalar_select %p264, %s22, 0
      %s266 = smul.addr %s263, 8
      %s267 = sadd.s32 %s265, %s266
      %s268 = smul.addr %s267, 8
      %s269 = scalar_lea.vmem %s0, %s268
      %p270 = scmp.lt.s32.totalorder %s21, 1
      %s271 = scalar_select %p270, %s21, 1
      %p272 = scmp.lt.s32.totalorder %s22, 0
      %s273 = scalar_select %p272, %s22, 0
      %s274 = sadd.s32 %s273, %s271
      %s275 = smul.addr %s274, 8
      %s276 = scalar_lea.vmem %s3, %s275
      %p277 = scmp.lt.s32.totalorder %s21, 1
      %s278 = scalar_select %p277, %s21, 1
      %p279 = scmp.lt.s32.totalorder %s22, 0
      %s280 = scalar_select %p279, %s22, 0
      %s281 = sadd.s32 %s280, %s278
      %s282 = smul.addr %s281, 8
      %s283 = scalar_lea.vmem %s4, %s282
      %p284 = scmp.lt.s32.totalorder %s21, 1
      %s285 = scalar_select %p284, %s21, 1
      %p286 = scmp.lt.s32.totalorder %s22, 0
      %s287 = scalar_select %p286, %s22, 0
      %s288 = sadd.s32 %s287, %s285
      %s289 = smul.addr %s288, 8
      %s290 = scalar_lea.vmem %s5, %s289
      %v291 = vld [vmem:[%s269] sm:$0xff]
      %v292 = vld [vmem:[%s269 + $0x8] sm:$0xff]
      %v293 = vld [vmem:[%s269 + $0x10] sm:$0xff]
      %v294 = vld [vmem:[%s269 + $0x18] sm:$0xff]
      %v295 = vld [vmem:[%s269 + $0x20] sm:$0xff]
      %v296 = vld [vmem:[%s269 + $0x28] sm:$0xff]
      %v297 = vld [vmem:[%s269 + $0x30] sm:$0xff]
      %v298 = vld [vmem:[%s269 + $0x38] sm:$0xff]
      %v299 = vld [vmem:[%s1] sm:$0xff]
      %vm300 = vcmask 523264
      %v302 = vsel %vm300, %v299, 0
      %304 = vmatprep.subr.mxu0 0.0
      %305 = vmatpush1.msra.mxu0 %v291
      %306 = vmatprep.subr.mxu0 0.0
      %307 = vmatpush1.msra.mxu0 %v292
      %308 = vmatprep.subr.mxu0 0.0
      %309 = vmatpush1.msra.mxu0 %v293
      %310 = vmatprep.subr.mxu0 0.0
      %311 = vmatpush1.msra.mxu0 %v294
      %312 = vmatprep.subr.mxu0 0.0
      %313 = vmatpush1.msra.mxu0 %v295
      %314 = vmatprep.subr.mxu0 0.0
      %315 = vmatpush1.msra.mxu0 %v296
      %316 = vmatprep.subr.mxu0 0.0
      %317 = vmatpush1.msra.mxu0 %v297
      %318 = vmatprep.subr.mxu0 0.0
      %319 = vmatpush1.msra.mxu0 %v298
      %320 = vmatprep.subr.mxu0 0.0
      %321 = vmatpush1.msra.mxu0 0.0
      %322 = vmatprep.subr.mxu0 0.0
      %323 = vmatpush1.msra.mxu0 0.0
      %324 = vmatprep.subr.mxu0 0.0
      %325 = vmatpush1.msra.mxu0 0.0
      %326 = vmatprep.subr.mxu0 0.0
      %327 = vmatpush1.msra.mxu0 0.0
      %328 = vmatprep.subr.mxu0 0.0
      %329 = vmatpush1.msra.mxu0 0.0
      %330 = vmatprep.subr.mxu0 0.0
      %331 = vmatpush1.msra.mxu0 0.0
      %332 = vmatprep.subr.mxu0 0.0
      %333 = vmatpush1.msra.mxu0 0.0
      %334 = vmatprep.subr.mxu0 0.0
      %335 = vmatpush1.msra.mxu0 0.0
      %336 = vmatprep.subr.mxu0 0.0
      %337 = vmatpush1.msra.mxu0 0.0
      %338 = vmatprep.subr.mxu0 0.0
      %339 = vmatpush1.msra.mxu0 0.0
      %340 = vmatprep.subr.mxu0 0.0
      %341 = vmatpush1.msra.mxu0 0.0
      %342 = vmatprep.subr.mxu0 0.0
      %343 = vmatpush1.msra.mxu0 0.0
      %344 = vmatprep.subr.mxu0 0.0
      %345 = vmatpush1.msra.mxu0 0.0
      %346 = vmatprep.subr.mxu0 0.0
      %347 = vmatpush1.msra.mxu0 0.0
      %348 = vmatprep.subr.mxu0 0.0
      %349 = vmatpush1.msra.mxu0 0.0
      %350 = vmatprep.subr.mxu0 0.0
      %351 = vmatpush1.msra.mxu0 0.0
      %352 = vmatprep.subr.mxu0 0.0
      %353 = vmatpush1.msra.mxu0 0.0
      %354 = vmatprep.subr.mxu0 0.0
      %355 = vmatpush1.msra.mxu0 0.0
      %356 = vmatprep.subr.mxu0 0.0
      %357 = vmatpush1.msra.mxu0 0.0
      %358 = vmatprep.subr.mxu0 0.0
      %359 = vmatpush1.msra.mxu0 0.0
      %360 = vmatprep.subr.mxu0 0.0
      %361 = vmatpush1.msra.mxu0 0.0
      %362 = vmatprep.subr.mxu0 0.0
      %363 = vmatpush1.msra.mxu0 0.0
      %364 = vmatprep.subr.mxu0 0.0
      %365 = vmatpush1.msra.mxu0 0.0
      %366 = vmatprep.subr.mxu0 0.0
      %367 = vmatpush1.msra.mxu0 0.0
      %368 = vmatprep.mubr.f32.mxu0 0.0
      %369 = vmatmul.mubr.f32.gmra.mrb[0].mxu0 %v302
      %v370 = vpop.f32.mrb[0].mxu0
      %v371 = vadd.f32 0.0, %v370
      %v372 = vpop.f32.mrb[0].mxu0
      %373 = vdwg.mxu0
      %s374 = scalar_lea.vmem %s1, 8
      %v375 = vld [vmem:[%s374] sm:$0xff]
      %v377 = vsel %vm300, %v375, 0
      %379 = vmatprep.subr.mxu0 0.0
      %380 = vmatpush1.msra.mxu0 %v291
      %381 = vmatprep.subr.mxu0 0.0
      %382 = vmatpush1.msra.mxu0 %v292
      %383 = vmatprep.subr.mxu0 0.0
      %384 = vmatpush1.msra.mxu0 %v293
      %385 = vmatprep.subr.mxu0 0.0
      %386 = vmatpush1.msra.mxu0 %v294
      %387 = vmatprep.subr.mxu0 0.0
      %388 = vmatpush1.msra.mxu0 %v295
      %389 = vmatprep.subr.mxu0 0.0
      %390 = vmatpush1.msra.mxu0 %v296
      %391 = vmatprep.subr.mxu0 0.0
      %392 = vmatpush1.msra.mxu0 %v297
      %393 = vmatprep.subr.mxu0 0.0
      %394 = vmatpush1.msra.mxu0 %v298
      %395 = vmatprep.subr.mxu0 0.0
      %396 = vmatpush1.msra.mxu0 0.0
      %397 = vmatprep.subr.mxu0 0.0
      %398 = vmatpush1.msra.mxu0 0.0
      %399 = vmatprep.subr.mxu0 0.0
      %400 = vmatpush1.msra.mxu0 0.0
      %401 = vmatprep.subr.mxu0 0.0
      %402 = vmatpush1.msra.mxu0 0.0
      %403 = vmatprep.subr.mxu0 0.0
      %404 = vmatpush1.msra.mxu0 0.0
      %405 = vmatprep.subr.mxu0 0.0
      %406 = vmatpush1.msra.mxu0 0.0
      %407 = vmatprep.subr.mxu0 0.0
      %408 = vmatpush1.msra.mxu0 0.0
      %409 = vmatprep.subr.mxu0 0.0
      %410 = vmatpush1.msra.mxu0 0.0
      %411 = vmatprep.subr.mxu0 0.0
      %412 = vmatpush1.msra.mxu0 0.0
      %413 = vmatprep.subr.mxu0 0.0
      %414 = vmatpush1.msra.mxu0 0.0
      %415 = vmatprep.subr.mxu0 0.0
      %416 = vmatpush1.msra.mxu0 0.0
      %417 = vmatprep.subr.mxu0 0.0
      %418 = vmatpush1.msra.mxu0 0.0
      %419 = vmatprep.subr.mxu0 0.0
      %420 = vmatpush1.msra.mxu0 0.0
      %421 = vmatprep.subr.mxu0 0.0
      %422 = vmatpush1.msra.mxu0 0.0
      %423 = vmatprep.subr.mxu0 0.0
      %424 = vmatpush1.msra.mxu0 0.0
      %425 = vmatprep.subr.mxu0 0.0
      %426 = vmatpush1.msra.mxu0 0.0
      %427 = vmatprep.subr.mxu0 0.0
      %428 = vmatpush1.msra.mxu0 0.0
      %429 = vmatprep.subr.mxu0 0.0
      %430 = vmatpush1.msra.mxu0 0.0
      %431 = vmatprep.subr.mxu0 0.0
      %432 = vmatpush1.msra.mxu0 0.0
      %433 = vmatprep.subr.mxu0 0.0
      %434 = vmatpush1.msra.mxu0 0.0
      %435 = vmatprep.subr.mxu0 0.0
      %436 = vmatpush1.msra.mxu0 0.0
      %437 = vmatprep.subr.mxu0 0.0
      %438 = vmatpush1.msra.mxu0 0.0
      %439 = vmatprep.subr.mxu0 0.0
      %440 = vmatpush1.msra.mxu0 0.0
      %441 = vmatprep.subr.mxu0 0.0
      %442 = vmatpush1.msra.mxu0 0.0
      %443 = vmatprep.mubr.f32.mxu0 0.0
      %444 = vmatmul.mubr.f32.gmra.mrb[0].mxu0 %v377
      %v445 = vpop.f32.mrb[0].mxu0
      %v446 = vadd.f32 0.0, %v445
      %v447 = vpop.f32.mrb[0].mxu0
      %448 = vdwg.mxu0
      %v449 = vmax.f32 %v371, %v446
      %s450 = scalar_lea.vmem %s1, 16
      %v451 = vld [vmem:[%s450] sm:$0xff]
      %v453 = vsel %vm300, %v451, 0
      %455 = vmatprep.subr.mxu0 0.0
      %456 = vmatpush1.msra.mxu0 %v291
      %457 = vmatprep.subr.mxu0 0.0
      %458 = vmatpush1.msra.mxu0 %v292
      %459 = vmatprep.subr.mxu0 0.0
      %460 = vmatpush1.msra.mxu0 %v293
      %461 = vmatprep.subr.mxu0 0.0
      %462 = vmatpush1.msra.mxu0 %v294
      %463 = vmatprep.subr.mxu0 0.0
      %464 = vmatpush1.msra.mxu0 %v295
      %465 = vmatprep.subr.mxu0 0.0
      %466 = vmatpush1.msra.mxu0 %v296
      %467 = vmatprep.subr.mxu0 0.0
      %468 = vmatpush1.msra.mxu0 %v297
      %469 = vmatprep.subr.mxu0 0.0
      %470 = vmatpush1.msra.mxu0 %v298
      %471 = vmatprep.subr.mxu0 0.0
      %472 = vmatpush1.msra.mxu0 0.0
      %473 = vmatprep.subr.mxu0 0.0
      %474 = vmatpush1.msra.mxu0 0.0
      %475 = vmatprep.subr.mxu0 0.0
      %476 = vmatpush1.msra.mxu0 0.0
      %477 = vmatprep.subr.mxu0 0.0
      %478 = vmatpush1.msra.mxu0 0.0
      %479 = vmatprep.subr.mxu0 0.0
      %480 = vmatpush1.msra.mxu0 0.0
      %481 = vmatprep.subr.mxu0 0.0
      %482 = vmatpush1.msra.mxu0 0.0
      %483 = vmatprep.subr.mxu0 0.0
      %484 = vmatpush1.msra.mxu0 0.0
      %485 = vmatprep.subr.mxu0 0.0
      %486 = vmatpush1.msra.mxu0 0.0
      %487 = vmatprep.subr.mxu0 0.0
      %488 = vmatpush1.msra.mxu0 0.0
      %489 = vmatprep.subr.mxu0 0.0
      %490 = vmatpush1.msra.mxu0 0.0
      %491 = vmatprep.subr.mxu0 0.0
      %492 = vmatpush1.msra.mxu0 0.0
      %493 = vmatprep.subr.mxu0 0.0
      %494 = vmatpush1.msra.mxu0 0.0
      %495 = vmatprep.subr.mxu0 0.0
      %496 = vmatpush1.msra.mxu0 0.0
      %497 = vmatprep.subr.mxu0 0.0
      %498 = vmatpush1.msra.mxu0 0.0
      %499 = vmatprep.subr.mxu0 0.0
      %500 = vmatpush1.msra.mxu0 0.0
      %501 = vmatprep.subr.mxu0 0.0
      %502 = vmatpush1.msra.mxu0 0.0
      %503 = vmatprep.subr.mxu0 0.0
      %504 = vmatpush1.msra.mxu0 0.0
      %505 = vmatprep.subr.mxu0 0.0
      %506 = vmatpush1.msra.mxu0 0.0
      %507 = vmatprep.subr.mxu0 0.0
      %508 = vmatpush1.msra.mxu0 0.0
      %509 = vmatprep.subr.mxu0 0.0
      %510 = vmatpush1.msra.mxu0 0.0
      %511 = vmatprep.subr.mxu0 0.0
      %512 = vmatpush1.msra.mxu0 0.0
      %513 = vmatprep.subr.mxu0 0.0
      %514 = vmatpush1.msra.mxu0 0.0
      %515 = vmatprep.subr.mxu0 0.0
      %516 = vmatpush1.msra.mxu0 0.0
      %517 = vmatprep.subr.mxu0 0.0
      %518 = vmatpush1.msra.mxu0 0.0
      %519 = vmatprep.mubr.f32.mxu0 0.0
      %520 = vmatmul.mubr.f32.gmra.mrb[0].mxu0 %v453
      %v521 = vpop.f32.mrb[0].mxu0
      %v522 = vadd.f32 0.0, %v521
      %v523 = vpop.f32.mrb[0].mxu0
      %524 = vdwg.mxu0
      %v525 = vmax.f32 %v449, %v522
      %s526 = scalar_lea.vmem %s1, 24
      %v527 = vld [vmem:[%s526] sm:$0xff]
      %v529 = vsel %vm300, %v527, 0
      %531 = vmatprep.subr.mxu0 0.0
      %532 = vmatpush1.msra.mxu0 %v291
      %533 = vmatprep.subr.mxu0 0.0
      %534 = vmatpush1.msra.mxu0 %v292
      %535 = vmatprep.subr.mxu0 0.0
      %536 = vmatpush1.msra.mxu0 %v293
      %537 = vmatprep.subr.mxu0 0.0
      %538 = vmatpush1.msra.mxu0 %v294
      %539 = vmatprep.subr.mxu0 0.0
      %540 = vmatpush1.msra.mxu0 %v295
      %541 = vmatprep.subr.mxu0 0.0
      %542 = vmatpush1.msra.mxu0 %v296
      %543 = vmatprep.subr.mxu0 0.0
      %544 = vmatpush1.msra.mxu0 %v297
      %545 = vmatprep.subr.mxu0 0.0
      %546 = vmatpush1.msra.mxu0 %v298
      %547 = vmatprep.subr.mxu0 0.0
      %548 = vmatpush1.msra.mxu0 0.0
      %549 = vmatprep.subr.mxu0 0.0
      %550 = vmatpush1.msra.mxu0 0.0
      %551 = vmatprep.subr.mxu0 0.0
      %552 = vmatpush1.msra.mxu0 0.0
      %553 = vmatprep.subr.mxu0 0.0
      %554 = vmatpush1.msra.mxu0 0.0
      %555 = vmatprep.subr.mxu0 0.0
      %556 = vmatpush1.msra.mxu0 0.0
      %557 = vmatprep.subr.mxu0 0.0
      %558 = vmatpush1.msra.mxu0 0.0
      %559 = vmatprep.subr.mxu0 0.0
      %560 = vmatpush1.msra.mxu0 0.0
      %561 = vmatprep.subr.mxu0 0.0
      %562 = vmatpush1.msra.mxu0 0.0
      %563 = vmatprep.subr.mxu0 0.0
      %564 = vmatpush1.msra.mxu0 0.0
      %565 = vmatprep.subr.mxu0 0.0
      %566 = vmatpush1.msra.mxu0 0.0
      %567 = vmatprep.subr.mxu0 0.0
      %568 = vmatpush1.msra.mxu0 0.0
      %569 = vmatprep.subr.mxu0 0.0
      %570 = vmatpush1.msra.mxu0 0.0
      %571 = vmatprep.subr.mxu0 0.0
      %572 = vmatpush1.msra.mxu0 0.0
      %573 = vmatprep.subr.mxu0 0.0
      %574 = vmatpush1.msra.mxu0 0.0
      %575 = vmatprep.subr.mxu0 0.0
      %576 = vmatpush1.msra.mxu0 0.0
      %577 = vmatprep.subr.mxu0 0.0
      %578 = vmatpush1.msra.mxu0 0.0
      %579 = vmatprep.subr.mxu0 0.0
      %580 = vmatpush1.msra.mxu0 0.0
      %581 = vmatprep.subr.mxu0 0.0
      %582 = vmatpush1.msra.mxu0 0.0
      %583 = vmatprep.subr.mxu0 0.0
      %584 = vmatpush1.msra.mxu0 0.0
      %585 = vmatprep.subr.mxu0 0.0
      %586 = vmatpush1.msra.mxu0 0.0
      %587 = vmatprep.subr.mxu0 0.0
      %588 = vmatpush1.msra.mxu0 0.0
      %589 = vmatprep.subr.mxu0 0.0
      %590 = vmatpush1.msra.mxu0 0.0
      %591 = vmatprep.subr.mxu0 0.0
      %592 = vmatpush1.msra.mxu0 0.0
      %593 = vmatprep.subr.mxu0 0.0
      %594 = vmatpush1.msra.mxu0 0.0
      %595 = vmatprep.mubr.f32.mxu0 0.0
      %596 = vmatmul.mubr.f32.gmra.mrb[0].mxu0 %v529
      %v597 = vpop.f32.mrb[0].mxu0
      %v598 = vadd.f32 0.0, %v597
      %v599 = vpop.f32.mrb[0].mxu0
      %600 = vdwg.mxu0
      %v601 = vmax.f32 %v525, %v598
      %v602 = vld [vmem:[%s2] sm:$0xff]
      %604 = vset.pattern.permute.xlu0 0
      %605 = vperm.xlu0 %604, %v602
      %v606 = vpop.permute.xlu0 %605
      %v608 = vadd.f32 %v601, %v606
      %vm609 = vcmp.gt.f32.partialorder %v608, 0.0
      %v610 = vmul.f32 %v608, 0.01
      %v611 = vsel %vm609, %v608, %v610
      %612 = vst.msk [vmem:[%s276] sm:$0xff] %vm300, %v611
      %v613 = vsel %vm300, %v611, 0.0
      %614 = vadd.xlane.f32.xlu0 %v613
      %v615 = vpop.xlane.xlu0 %614
      %v616 = vmul.f32 %v615, 0.015625
      %v617 = vsub.f32 %v611, %v616
      %vm618 = vcmask 7168
      %619 = vst.msk [vmem:[%s283] sm:$0xff] %vm618, %v615
      %v620 = vmul.f32 %v617, %v617
      %v621 = vsel %vm300, %v620, 0.0
      %622 = vadd.xlane.f32.xlu0 %v621
      %v623 = vpop.xlane.xlu0 %622
      %624 = vst.msk [vmem:[%s290] sm:$0xff] %vm618, %v623
      %p625 = scmp.lt.s32.totalorder %s21, 1
      %s626 = scalar_select %p625, %s21, 1
      %p627 = scmp.lt.s32.totalorder %s22, 0
      %s628 = scalar_select %p627, %s22, 0
      %s629 = sadd.s32 %s628, %s626
      %s630 = smul.addr %s629, 8
      %s631 = scalar_lea.vmem %s3, %s630
      %p632 = scmp.lt.s32.totalorder %s21, 1
      %s633 = scalar_select %p632, %s21, 1
      %p634 = scmp.lt.s32.totalorder %s22, 0
      %s635 = scalar_select %p634, %s22, 0
      %s636 = sadd.s32 %s635, %s633
      %s637 = smul.addr %s636, 8
      %s638 = scalar_lea.vmem %s4, %s637
      %p639 = scmp.lt.s32.totalorder %s21, 1
      %s640 = scalar_select %p639, %s21, 1
      %p641 = scmp.lt.s32.totalorder %s22, 0
      %s642 = scalar_select %p641, %s22, 0
      %s643 = sadd.s32 %s642, %s640
      %s644 = smul.addr %s643, 8
      %s645 = scalar_lea.vmem %s5, %s644
      // Predicated region
      $region33: #{conv_net_forward.2} parent=31 // pred_check
        %p646 = pneg %p119
      $region34: #{conv_net_forward.2} parent=31 // pred_check_branch
        %648 = sbr.rel (%p646) target = $region36
      $region35: #{conv_net_forward.2} parent=31 // pred_region
        _
      $region36: #{conv_net_forward.2} parent=31 // pred_fallthru
        _
      // Predicated region
      $region37: #{conv_net_forward.2} parent=31 // pred_check
        %p649 = pneg %p147
      $region38: #{conv_net_forward.2} parent=31 // pred_check_branch
        %651 = sbr.rel (%p649) target = $region40
      $region39: #{conv_net_forward.2} parent=31 // pred_region
        _
      $region40: #{conv_net_forward.2} parent=31 // pred_fallthru
        _
      // Predicated region
      $region41: #{conv_net_forward.2} parent=31 // pred_check
        %p652 = pneg %p175
      $region42: #{conv_net_forward.2} parent=31 // pred_check_branch
        %654 = sbr.rel (%p652) target = $region44
      $region43: #{conv_net_forward.2} parent=31 // pred_region
        _
      $region44: #{conv_net_forward.2} parent=31 // pred_fallthru
        _
    $region32: #{conv_net_forward.2} parent=5 // pred_fallthru
      _
    %p655 = scmp.le.s32.totalorder 2, %s12
    // Predicated region
    $region45: #{conv_net_forward.2} parent=5 // pred_check
      %p656 = pneg %p655
    $region46: #{conv_net_forward.2} parent=5 // pred_check_branch
      %658 = sbr.rel (%p656) target = $region48
    $region47: #{conv_net_forward.2} parent=5 // pred_region
      %s659 = ssub.s32 %s12, 2
      // Predicated region
      $region49: #{conv_net_forward.2} parent=47 // pred_check
        %p660 = pneg %p125
      $region50: #{conv_net_forward.2} parent=47 // pred_check_branch
        %662 = sbr.rel (%p660) target = $region52
      $region51: #{conv_net_forward.2} parent=47 // pred_region
        %p663 = scmp.lt.s32.totalorder %s23, 1
        %s664 = scalar_select %p663, %s23, 1
        %p665 = scmp.lt.s32.totalorder %s24, 0
        %s666 = scalar_select %p665, %s24, 0
        %s667 = sadd.s32 %s666, %s664
        %s668 = smul.addr %s667, 8
        %s669 = scalar_lea.vmem %s3, %s668
      $region52: #{conv_net_forward.2} parent=47 // pred_fallthru
        _
      // Predicated region
      $region53: #{conv_net_forward.2} parent=47 // pred_check
        %p670 = pneg %p153
      $region54: #{conv_net_forward.2} parent=47 // pred_check_branch
        %672 = sbr.rel (%p670) target = $region56
      $region55: #{conv_net_forward.2} parent=47 // pred_region
        %p673 = scmp.lt.s32.totalorder %s23, 1
        %s674 = scalar_select %p673, %s23, 1
        %p675 = scmp.lt.s32.totalorder %s24, 0
        %s676 = scalar_select %p675, %s24, 0
        %s677 = sadd.s32 %s676, %s674
        %s678 = smul.addr %s677, 8
        %s679 = scalar_lea.vmem %s4, %s678
      $region56: #{conv_net_forward.2} parent=47 // pred_fallthru
        _
      // Predicated region
      $region57: #{conv_net_forward.2} parent=47 // pred_check
        %p680 = pneg %p181
      $region58: #{conv_net_forward.2} parent=47 // pred_check_branch
        %682 = sbr.rel (%p680) target = $region60
      $region59: #{conv_net_forward.2} parent=47 // pred_region
        %p683 = scmp.lt.s32.totalorder %s23, 1
        %s684 = scalar_select %p683, %s23, 1
        %p685 = scmp.lt.s32.totalorder %s24, 0
        %s686 = scalar_select %p685, %s24, 0
        %s687 = sadd.s32 %s686, %s684
        %s688 = smul.addr %s687, 8
        %s689 = scalar_lea.vmem %s5, %s688
      $region60: #{conv_net_forward.2} parent=47 // pred_fallthru
        _
    $region48: #{conv_net_forward.2} parent=5 // pred_fallthru
      _
  $region6: #{conv_net_forward.2} parent=0 // loop_footer
    %s16 = sadd.s32 1, %s12
  $region7: #{conv_net_forward.2} parent=0 // loop_footer_branch
    %11 = sbr.rel target = $region3
  $region8: #{conv_net_forward.2} parent=0 // loop_exit
    _

</llo_original>
